<compile_context>
chip_gen: v7x
topology: tpu7x:2x2x1
jax: 0.10.0
libtpu: 0.0.40
codegen_flags: <defaults>
</compile_context>

<pallas_src>
import functools

import jax
import jax.numpy as jnp
from jax.experimental import pallas as pl
from jax.experimental.pallas import tpu as pltpu

_LANES = 128


def _make_kent_kernel(inv_n, last_param_weight):
    inv_n = float(inv_n)
    w = float(last_param_weight)

    def kernel(x_ref, out_ref, acc_ref):
        i = pl.program_id(0)

        @pl.when(i == 0)
        def _init():
            acc_ref[0] = jnp.float32(0.0)
            acc_ref[1] = jnp.float32(0.0)

        # x: (4, TR, 128) = [pred_kappa, pred_last, tgt_kappa, tgt_last] rows.
        x = x_ref[...].astype(jnp.float32)
        diff = x[0:2] - x[2:4]                      # (2, TR, 128)
        absd = jnp.abs(diff)
        # HuberLoss(delta=1.0), reduction='none':
        #   0.5*d^2 if |d| <= 1 else |d| - 0.5
        huber = jnp.where(absd <= 1.0, 0.5 * diff * diff, absd - 0.5)

        # Per-tile partial sums accumulated in SMEM (zero-padded tail rows
        # contribute exactly 0, so no masking is needed).
        acc_ref[0] += jnp.sum(huber[0])
        acc_ref[1] += jnp.sum(huber[1])

        @pl.when(i == pl.num_programs(0) - 1)
        def _finalize():
            kappa = acc_ref[0] * inv_n
            last = w * (acc_ref[1] * inv_n)
            out_ref[0] = kappa
            out_ref[1] = last
            out_ref[2] = kappa + last

    return kernel


def _kent_loss_reference(pred, target, last_param_weight=0.5):
    """Pure-JAX path (also used for tiny batches where a kernel launch loses)."""
    p = pred[:, 0:2].astype(jnp.float32)
    t = target[:, 0:2].astype(jnp.float32)
    diff = p - t
    absd = jnp.abs(diff)
    huber = jnp.where(absd <= 1.0, 0.5 * diff * diff, absd - 0.5)
    kappa = jnp.mean(huber[:, 0])
    last = last_param_weight * jnp.mean(huber[:, 1])
    return kappa + last, {"kappa_loss": kappa, "last_param_loss": last}


def kent_loss(pred, target, last_param_weight=0.5, *, tile_rows=1024, use_pallas=None):
    """Pallas TPU implementation of KentLoss.forward.

    pred, target: [N, P] with P >= 2 (only columns 0 and 1 are used).
    Returns (total_loss, {'kappa_loss': ..., 'last_param_loss': ...}) as JAX
    scalars (weighted last_param_loss), matching the PyTorch module's math.
    """
    assert pred.shape == target.shape and pred.ndim == 2 and pred.shape[1] >= 2
    n = pred.shape[0]

    if use_pallas is None:
        # Below ~1K rows the fixed kernel-launch/pipeline overhead dominates;
        # XLA fuses an elementwise + two reductions optimally at that scale.
        use_pallas = n >= 1024
    if not use_pallas:
        return _kent_loss_reference(pred, target, last_param_weight)

    # --- Build the lane-dense [4, R, 128] slab (only the 2 used columns). ---
    cols = [pred[:, 0], pred[:, 1], target[:, 0], target[:, 1]]

    r = pl.cdiv(n, _LANES)                       # rows of 128 lanes needed
    r8 = ((r + 7) // 8) * 8                      # sublane-align
    tr = min(int(tile_rows), r8)
    tr = max(8, (tr // 8) * 8)                   # tile rows: multiple of 8
    r_pad = ((r8 + tr - 1) // tr) * tr           # pad to whole tiles
    n_pad = r_pad * _LANES

    def to_rows(v):
        v = jnp.pad(v, (0, n_pad - n))           # zero pad -> huber contribution 0
        return v.reshape(r_pad, _LANES)

    x = jnp.stack([to_rows(c) for c in cols])    # (4, r_pad, 128)

    kernel = _make_kent_kernel(1.0 / n, last_param_weight)
    out = pl.pallas_call(
        kernel,
        out_shape=jax.ShapeDtypeStruct((3,), jnp.float32),
        grid=(r_pad // tr,),
        in_specs=[pl.BlockSpec((4, tr, _LANES), lambda i: (0, i, 0))],
        out_specs=pl.BlockSpec(memory_space=pltpu.MemorySpace.SMEM),
        scratch_shapes=[pltpu.SMEM((2,), jnp.float32)],
        compiler_params=pltpu.CompilerParams(
            dimension_semantics=("arbitrary",),       # reduction axis
            vmem_limit_bytes=32 * 1024 * 1024,        # safe headroom incl. v7x
        ),
    )(x)

    total_loss = out[2]
    return total_loss, {"kappa_loss": out[0], "last_param_loss": out[1]}


if __name__ == "__main__":
    key = jax.random.PRNGKey(0)
    k1, k2 = jax.random.split(key)

    # Small-but-representative shape: N not a multiple of 128, P > 2 (extra
    # columns are never DMA'd), and tile_rows=8 forces a multi-step grid so the
    # accumulate/epilogue path is exercised.
    N, P = 4000, 4
    pred = jax.random.normal(k1, (N, P), dtype=jnp.float32) * 2.0
    target = jax.random.normal(k2, (N, P), dtype=jnp.float32) * 2.0

    total, parts = kent_loss(pred, target, 0.5, tile_rows=8, use_pallas=True)
    total = jax.block_until_ready(total)

    ref_total, ref_parts = _kent_loss_reference(pred, target, 0.5)
    ref_total = jax.block_until_ready(ref_total)
    assert jnp.allclose(total, ref_total, rtol=1e-5, atol=1e-6), (total, ref_total)
    assert jnp.allclose(parts["kappa_loss"], ref_parts["kappa_loss"], rtol=1e-5, atol=1e-6)
    assert jnp.allclose(parts["last_param_loss"], ref_parts["last_param_loss"],
                        rtol=1e-5, atol=1e-6)

    # Tiny-batch dispatch (pure-JAX fused path; kernel launch would dominate).
    total_small, _ = kent_loss(pred[:8], target[:8], 0.5)
    jax.block_until_ready(total_small)

    # Jittable end-to-end (no host-side float() syncs inside kent_loss).
    jit_total, _ = jax.jit(
        functools.partial(kent_loss, last_param_weight=0.5,
                          tile_rows=8, use_pallas=True)
    )(pred, target)
    jit_total = jax.block_until_ready(jit_total)
    assert jnp.allclose(jit_total, ref_total, rtol=1e-5, atol=1e-6)

    print("KERNEL_OK")
</pallas_src>

<mosaic_0001>
module attributes {stable_mosaic.version = 11 : i64} {
  func.func @kernel(%arg0: i32, %arg1: memref<4x8x128xf32, #tpu.memory_space<vmem>>, %arg2: memref<3xf32, #tpu.memory_space<smem>>, %arg3: memref<2xf32, #tpu.memory_space<smem>>) attributes {dimension_semantics = [#tpu.dimension_semantics<arbitrary>], iteration_bounds = array<i64: 4>, scalar_prefetch = 0 : i64, scratch_operands = 1 : i64, tpu.core_type = #tpu.core_type<tc>, window_params = [{transform_indices = @transform_0, window_bounds = array<i64: 4, 8, 128>}, {transform_indices = @transform_1, window_bounds = array<i64: 3>}]} {
    %c0_i32 = arith.constant 0 : i32
    %0 = arith.cmpi eq, %arg0, %c0_i32 : i32
    %1 = arith.extui %0 : i1 to i32
    %c0_i32_0 = arith.constant 0 : i32
    %2 = arith.cmpi ne, %1, %c0_i32_0 : i32
    scf.if %2 {
      %cst_11 = arith.constant 0.000000e+00 : f32
      %c0_12 = arith.constant 0 : index
      %37 = memref.load %arg3[%c0_12] : memref<2xf32, #tpu.memory_space<smem>>
      memref.store %cst_11, %arg3[%c0_12] : memref<2xf32, #tpu.memory_space<smem>>
      %cst_13 = arith.constant 0.000000e+00 : f32
      %c1_14 = arith.constant 1 : index
      %38 = memref.load %arg3[%c1_14] : memref<2xf32, #tpu.memory_space<smem>>
      memref.store %cst_13, %arg3[%c1_14] : memref<2xf32, #tpu.memory_space<smem>>
    } else {
    }
    %c0 = arith.constant 0 : index
    %c0_1 = arith.constant 0 : index
    %c0_2 = arith.constant 0 : index
    %3 = vector.load %arg1[%c0, %c0_1, %c0_2] : memref<4x8x128xf32, #tpu.memory_space<vmem>>, vector<4x8x128xf32>
    %4 = vector.extract_strided_slice %3 {offsets = [0, 0, 0], sizes = [2, 8, 128], strides = [1, 1, 1]} : vector<4x8x128xf32> to vector<2x8x128xf32>
    %5 = vector.extract_strided_slice %3 {offsets = [2, 0, 0], sizes = [2, 8, 128], strides = [1, 1, 1]} : vector<4x8x128xf32> to vector<2x8x128xf32>
    %6 = arith.subf %4, %5 : vector<2x8x128xf32>
    %7 = math.absf %6 : vector<2x8x128xf32>
    %cst = arith.constant 1.000000e+00 : f32
    %8 = vector.broadcast %cst : f32 to vector<2x8x128xf32>
    %9 = arith.cmpf ole, %7, %8 : vector<2x8x128xf32>
    %cst_3 = arith.constant 5.000000e-01 : f32
    %10 = vector.broadcast %cst_3 : f32 to vector<2x8x128xf32>
    %11 = arith.mulf %10, %6 : vector<2x8x128xf32>
    %12 = arith.mulf %11, %6 : vector<2x8x128xf32>
    %cst_4 = arith.constant 5.000000e-01 : f32
    %13 = vector.broadcast %cst_4 : f32 to vector<2x8x128xf32>
    %14 = arith.subf %7, %13 : vector<2x8x128xf32>
    %15 = arith.select %9, %12, %14 : vector<2x8x128xi1>, vector<2x8x128xf32>
    %c0_5 = arith.constant 0 : index
    %16 = memref.load %arg3[%c0_5] : memref<2xf32, #tpu.memory_space<smem>>
    %17 = vector.extract_strided_slice %15 {offsets = [0, 0, 0], sizes = [1, 8, 128], strides = [1, 1, 1]} : vector<2x8x128xf32> to vector<1x8x128xf32>
    %18 = vector.shape_cast %17 : vector<1x8x128xf32> to vector<8x128xf32>
    %19 = vector.shape_cast %18 : vector<8x128xf32> to vector<1x8x128xf32>
    %cst_6 = arith.constant dense<0.000000e+00> : vector<1xf32>
    %20 = vector.multi_reduction <add>, %19, %cst_6 [1, 2] : vector<1x8x128xf32> to vector<1xf32>
    %21 = vector.shape_cast %20 : vector<1xf32> to vector<1x1x1xf32>
    %22 = vector.extract %21[0, 0, 0] : f32 from vector<1x1x1xf32>
    %23 = arith.addf %16, %22 : f32
    %c0_7 = arith.constant 0 : index
    %24 = memref.load %arg3[%c0_7] : memref<2xf32, #tpu.memory_space<smem>>
    memref.store %23, %arg3[%c0_7] : memref<2xf32, #tpu.memory_space<smem>>
    %c1 = arith.constant 1 : index
    %25 = memref.load %arg3[%c1] : memref<2xf32, #tpu.memory_space<smem>>
    %26 = vector.extract_strided_slice %15 {offsets = [1, 0, 0], sizes = [1, 8, 128], strides = [1, 1, 1]} : vector<2x8x128xf32> to vector<1x8x128xf32>
    %27 = vector.shape_cast %26 : vector<1x8x128xf32> to vector<8x128xf32>
    %28 = vector.shape_cast %27 : vector<8x128xf32> to vector<1x8x128xf32>
    %cst_8 = arith.constant dense<0.000000e+00> : vector<1xf32>
    %29 = vector.multi_reduction <add>, %28, %cst_8 [1, 2] : vector<1x8x128xf32> to vector<1xf32>
    %30 = vector.shape_cast %29 : vector<1xf32> to vector<1x1x1xf32>
    %31 = vector.extract %30[0, 0, 0] : f32 from vector<1x1x1xf32>
    %32 = arith.addf %25, %31 : f32
    %c1_9 = arith.constant 1 : index
    %33 = memref.load %arg3[%c1_9] : memref<2xf32, #tpu.memory_space<smem>>
    memref.store %32, %arg3[%c1_9] : memref<2xf32, #tpu.memory_space<smem>>
    %c3_i32 = arith.constant 3 : i32
    %34 = arith.cmpi eq, %arg0, %c3_i32 : i32
    %35 = arith.extui %34 : i1 to i32
    %c0_i32_10 = arith.constant 0 : i32
    %36 = arith.cmpi ne, %35, %c0_i32_10 : i32
    scf.if %36 {
      %c0_11 = arith.constant 0 : index
      %37 = memref.load %arg3[%c0_11] : memref<2xf32, #tpu.memory_space<smem>>
      %cst_12 = arith.constant 2.500000e-04 : f32
      %38 = arith.mulf %37, %cst_12 : f32
      %c1_13 = arith.constant 1 : index
      %39 = memref.load %arg3[%c1_13] : memref<2xf32, #tpu.memory_space<smem>>
      %cst_14 = arith.constant 2.500000e-04 : f32
      %40 = arith.mulf %39, %cst_14 : f32
      %cst_15 = arith.constant 5.000000e-01 : f32
      %41 = arith.mulf %cst_15, %40 : f32
      %c0_16 = arith.constant 0 : index
      %42 = memref.load %arg2[%c0_16] : memref<3xf32, #tpu.memory_space<smem>>
      memref.store %38, %arg2[%c0_16] : memref<3xf32, #tpu.memory_space<smem>>
      %c1_17 = arith.constant 1 : index
      %43 = memref.load %arg2[%c1_17] : memref<3xf32, #tpu.memory_space<smem>>
      memref.store %41, %arg2[%c1_17] : memref<3xf32, #tpu.memory_space<smem>>
      %44 = arith.addf %38, %41 : f32
      %c2 = arith.constant 2 : index
      %45 = memref.load %arg2[%c2] : memref<3xf32, #tpu.memory_space<smem>>
      memref.store %44, %arg2[%c2] : memref<3xf32, #tpu.memory_space<smem>>
    } else {
    }
    return
  }
  func.func @transform_0(%arg0: i32) -> (i32, i32, i32) {
    %c0_i32 = arith.constant 0 : i32
    %c0_i32_0 = arith.constant 0 : i32
    %c0_i32_1 = arith.constant 0 : i32
    return %c0_i32, %arg0, %c0_i32_0 : i32, i32, i32
  }
  func.func @transform_1(%arg0: i32) -> i32 {
    %c0_i32 = arith.constant 0 : i32
    %c0_i32_0 = arith.constant 0 : i32
    return %c0_i32 : i32
  }
}

</mosaic_0001>

<llo_original>
// kernel: tpu_custom_call.1
$region0: #{tpu_custom_call.1}
  #allocation0 [shape = 'u32[]', space=smem, size = 0x4, offset = 0x4, fixed_abs, tag = 'smem constant byte address 0x4 - core index']
  #allocation1 [shape = 'u32[144,128]{1,0:T(1,128)}', space=vmem, size = 0x12000, scoped, tag = 'internal scratch']
  #allocation2 [shape = 'f32[2]{0:T(128)}', space=smem, size = 0x200, scoped, tag = 'scratch operand']
  %s0 = inlined_call_operand.hbm [shape: f32[4,32,128], index: 0, kind: input, shape index: {}]
  %s1 = inlined_call_operand.hbm [shape: f32[3], index: 1, kind: output, shape index: {}]
  %s2 = sld [smem:[#allocation0]]
  $region49: #{tpu_custom_call.1} parent=0
    _
  %s4 = ssub.s32 1, %s2
  %s5 = scalar_select 0, %s4, %s2
  $region1: #{tpu_custom_call.1} parent=0
    #allocation3 [shape = 'u8[32768]{0}', space=vmem, size = 0x8000, scoped, tag = 'input window, operand 0']
    #allocation4 [shape = 's32[2]{0}', space=sflag, size = 0x8, scoped, tag = 'scoped memory for tpu_custom_call.1']
    #allocation5 [shape = 's32[2]{0}', space=sflag, size = 0x8, scoped, tag = 'scoped memory for tpu_custom_call.1']
    #allocation6 [shape = 'u8[512]{0}', space=smem, size = 0x200, scoped, tag = 'output window, operand 0, single buffered']
    %6 = vsyncpa [#allocation4], 0
    %s7 = scalar_lea.sflag [#allocation4], 1
    %8 = vsyncpa %s7, 0
    %9 = vsyncpa [#allocation5], 0
    loop: start=0, step=1, limit=6
    $region2: #{tpu_custom_call.1} parent=1 // loop_pre_header
      _
    $region3: #{tpu_custom_call.1} parent=1 // loop_header
      %s11 = sphi 0, %s15
      %p12 = scmp.ge.s32.totalorder %s11, 6
      %s21 = sphi 0, %s23
      %s24 = sphi 0, %s21
      %s25 = sphi 0, %s24
      %s41 = sphi 0, %s25
      %s45 = sphi 0, %s45
      %s47 = sphi 0, %s45
      %s48 = sphi 0, %s47
      %s62 = sphi 0, %s48
    $region4: #{tpu_custom_call.1} parent=1 // loop_header_branch
      %14 = sbr.rel (%p12) target = $region8
    $region5: #{tpu_custom_call.1} parent=1 // loop_body
      %s16 = ssub.s32 %s11, 1
      %s17 = ssub.s32 %s11, 2
      %s18 = sadd.s32 %s11, 1
      %s19 = ssub.s32 %s11, %s18
      %p20 = scmp.eq.s32.totalorder %s19, 0
      %s22 = sadd.s32 %s21, 1
      %s23 = scalar_select %p20, %s21, %s22
      %p26 = pneg %p20
      %p27 = scmp.eq.s32.totalorder %s11, 3
      %p28 = por %p26, %p27
      %p29 = scmp.ne.s32.totalorder %s21, %s24
      %p30 = scmp.eq.s32.totalorder %s11, 0
      %p31 = por %p29, %p30
      %p32 = scmp.ne.s32.totalorder %s21, %s24
      %p33 = scmp.eq.s32.totalorder %s16, 3
      %p34 = por %p32, %p33
      %p35 = scmp.ne.s32.totalorder %s24, %s25
      %p36 = scmp.eq.s32.totalorder %s16, 0
      %p37 = por %p35, %p36
      %p38 = scmp.ne.s32.totalorder %s24, %s25
      %p39 = scmp.eq.s32.totalorder %s17, 3
      %p40 = por %p38, %p39
      %p42 = scmp.ne.s32.totalorder %s25, %s41
      %p43 = scmp.eq.s32.totalorder %s17, 0
      %p44 = por %p42, %p43
      %s46 = sadd.s32 %s45, 1
      %p49 = scmp.eq.s32.totalorder %s11, 3
      %p50 = scmp.ne.s32.totalorder %s45, %s47
      %p51 = scmp.eq.s32.totalorder %s11, 0
      %p52 = por %p50, %p51
      %p53 = scmp.ne.s32.totalorder %s45, %s47
      %p54 = scmp.eq.s32.totalorder %s16, 3
      %p55 = por %p53, %p54
      %p56 = scmp.ne.s32.totalorder %s47, %s48
      %p57 = scmp.eq.s32.totalorder %s16, 0
      %p58 = por %p56, %p57
      %p59 = scmp.ne.s32.totalorder %s47, %s48
      %p60 = scmp.eq.s32.totalorder %s17, 3
      %p61 = por %p59, %p60
      %p63 = scmp.ne.s32.totalorder %s48, %s62
      %p64 = scmp.eq.s32.totalorder %s17, 0
      %p65 = por %p63, %p64
      %p66 = scmp.le.s32.totalorder 1, %s11
      %p67 = scmp.lt.s32.totalorder %s11, 5
      %p68 = pnand %p66, %p67
      %p69 = pneg %p68
      // Predicated region
      $region9: #{tpu_custom_call.1} parent=5 // pred_check
        _
      $region10: #{tpu_custom_call.1} parent=5 // pred_check_branch
        %71 = sbr.rel (%p68) target = $region12
      $region11: #{tpu_custom_call.1} parent=5 // pred_region
        %s72 = ssub.s32 %s11, 1
      $region12: #{tpu_custom_call.1} parent=5 // pred_fallthru
        _
      %p73 = scmp.lt.s32.totalorder %s11, 4
      // Predicated region
      $region13: #{tpu_custom_call.1} parent=5 // pred_check
        %p74 = pneg %p73
      $region14: #{tpu_custom_call.1} parent=5 // pred_check_branch
        %76 = sbr.rel (%p74) target = $region16
      $region15: #{tpu_custom_call.1} parent=5 // pred_region
        // Predicated region
        $region17: #{tpu_custom_call.1} parent=15 // pred_check
          %p77 = pneg %p31
        $region18: #{tpu_custom_call.1} parent=15 // pred_check_branch
          %79 = sbr.rel (%p77) target = $region20
        $region19: #{tpu_custom_call.1} parent=15 // pred_region
          %s80 = sand.u32 %s21, 1
          %s81 = scalar_lea.sflag [#allocation4], %s80
          %s82 = sand.u32 %s21, 1
          %s83 = smul.addr %s82, 32
          %s84 = scalar_lea.vmem [#allocation3], %s83
          %s86 = ssub.s32 512, 512
          %87 = vsyncadd %s81, %s86
          %s88 = smul.addr %s11, 128
          %s89 = scalar_lea.hbm %s0, %s88
          %s90 = sshll.u32 %s84, 4
          %s91 = int_to_ptr.vmem [resolvable:$true] %s90
          %96 = dma.hbm_to_vmem [thread:$0]  %s89, 512, %s91, %s81, 512, 128, 8
        $region20: #{tpu_custom_call.1} parent=15 // pred_fallthru
          _
      $region16: #{tpu_custom_call.1} parent=5 // pred_fallthru
        _
      %p97 = scmp.le.s32.totalorder 1, %s11
      %p98 = scmp.lt.s32.totalorder %s11, 5
      %p99 = pnand %p97, %p98
      %p100 = pneg %p99
      // Predicated region
      $region21: #{tpu_custom_call.1} parent=5 // pred_check
        _
      $region22: #{tpu_custom_call.1} parent=5 // pred_check_branch
        %102 = sbr.rel (%p99) target = $region24
      $region23: #{tpu_custom_call.1} parent=5 // pred_region
        %s103 = ssub.s32 %s11, 1
        %s104 = sand.u32 %s24, 1
        %s105 = scalar_lea.sflag [#allocation4], %s104
        %s106 = sand.u32 %s24, 1
        %s107 = smul.addr %s106, 32
        %s108 = scalar_lea.vmem [#allocation3], %s107
        // Predicated region
        $region25: #{tpu_custom_call.1} parent=23 // pred_check
          %p109 = pneg %p37
        $region26: #{tpu_custom_call.1} parent=23 // pred_check_branch
          %111 = sbr.rel (%p109) target = $region28
        $region27: #{tpu_custom_call.1} parent=23 // pred_region
          %112 = dma.done %s105, 512
        $region28: #{tpu_custom_call.1} parent=23 // pred_fallthru
          _
        %s113 = sand.u32 %s24, 1
        %s114 = scalar_lea.sflag [#allocation4], %s113
        %s115 = sand.u32 %s24, 1
        %s116 = smul.addr %s115, 32
        %s117 = scalar_lea.vmem [#allocation3], %s116
        %p118 = pneg %p37
        %p119 = pneg %p34
        %p120 = pneg %p58
        %p121 = pneg %p55
        %p122 = scmp.eq.s32.totalorder %s16, 0
        // Predicated region
        $region29: #{tpu_custom_call.1} parent=23 // pred_check
          %p123 = pneg %p122
        $region30: #{tpu_custom_call.1} parent=23 // pred_check_branch
          %125 = sbr.rel (%p123) target = $region32
        $region31: #{tpu_custom_call.1} parent=23 // pred_region
          %s126 = scalar_lea.smem [#allocation2], 0
          %127 = sst [smem:[%s126]] 0.0
          %s128 = scalar_lea.smem [#allocation2], 1
          %129 = sst [smem:[%s128]] 0.0
        $region32: #{tpu_custom_call.1} parent=23 // pred_fallthru
          _
        %v130 = vld [vmem:[%s108] sm:$0xff]
        %v131 = vld [vmem:[%s108 + $0x8] sm:$0xff]
        %v132 = vld [vmem:[%s108 + $0x10] sm:$0xff]
        %v133 = vld [vmem:[%s108 + $0x18] sm:$0xff]
        %v134 = vsub.f32 %v130, %v132
        %v135 = vsub.f32 %v131, %v133
        %v136 = vand.u32 2147483647, %v134
        %v137 = vand.u32 2147483647, %v135
        %vm138 = vcmp.le.f32.partialorder %v136, 1.0
        %vm139 = vcmp.le.f32.partialorder %v137, 1.0
        %v140 = vmul.f32 %v134, 0.5
        %v141 = vmul.f32 %v135, 0.5
        %v142 = vmul.f32 %v140, %v134
        %v143 = vmul.f32 %v141, %v135
        %v144 = vsub.f32 %v136, 0.5
        %v145 = vsub.f32 %v137, 0.5
        %v146 = vsel %vm138, %v142, %v144
        %v147 = vsel %vm139, %v143, %v145
        %s148 = sld [smem:[#allocation2]]
        %149 = vadd.xlane.f32.xlu0 %v146
        %v150 = vpop.xlane.xlu0 %149
        %v151 = vrot.slane %v150, 4
        %v152 = vadd.f32 %v150, %v151
        %v153 = vrot.slane %v152, 2
        %v154 = vadd.f32 %v152, %v153
        %v155 = vrot.slane %v154, 1
        %v156 = vadd.f32 %v154, %v155
        %s157 = vtos %v156
        %s158 = sadd.f32 %s148, %s157
        %s159 = scalar_lea.smem [#allocation2], 0
        %160 = sst [smem:[%s159]] %s158
        %s161 = sld [smem:[#allocation2 + $0x1]]
        %162 = vadd.xlane.f32.xlu0 %v147
        %v163 = vpop.xlane.xlu0 %162
        %v164 = vrot.slane %v163, 4
        %v165 = vadd.f32 %v163, %v164
        %v166 = vrot.slane %v165, 2
        %v167 = vadd.f32 %v165, %v166
        %v168 = vrot.slane %v167, 1
        %v169 = vadd.f32 %v167, %v168
        %s170 = vtos %v169
        %s171 = sadd.f32 %s161, %s170
        %s172 = scalar_lea.smem [#allocation2], 1
        %173 = sst [smem:[%s172]] %s171
        %p174 = scmp.eq.s32.totalorder %s16, 3
        // Predicated region
        $region33: #{tpu_custom_call.1} parent=23 // pred_check
          %p175 = pneg %p174
        $region34: #{tpu_custom_call.1} parent=23 // pred_check_branch
          %177 = sbr.rel (%p175) target = $region36
        $region35: #{tpu_custom_call.1} parent=23 // pred_region
          %s178 = sld [smem:[#allocation2]]
          %s179 = smul.f32 %s178, 0.00025
          %s180 = sld [smem:[#allocation2 + $0x1]]
          %s181 = smul.f32 %s180, 0.00025
          %s182 = smul.f32 %s181, 0.5
          %s183 = scalar_lea.smem [#allocation6], 0
          %184 = sst [smem:[%s183]] %s179
          %s185 = scalar_lea.smem [#allocation6], 1
          %186 = sst [smem:[%s185]] %s182
          %s187 = sadd.f32 %s179, %s182
          %s188 = scalar_lea.smem [#allocation6], 2
          %189 = sst [smem:[%s188]] %s187
        $region36: #{tpu_custom_call.1} parent=23 // pred_fallthru
          _
        // Predicated region
        $region37: #{tpu_custom_call.1} parent=23 // pred_check
          %p190 = pneg %p55
        $region38: #{tpu_custom_call.1} parent=23 // pred_check_branch
          %192 = sbr.rel (%p190) target = $region40
        $region39: #{tpu_custom_call.1} parent=23 // pred_region
          %s194 = ssub.s32 16, 16
          %195 = vsyncadd [#allocation5], %s194
          %198 = dma.smem_to_hbm [#allocation6], 16, %s1, [#allocation5]
        $region40: #{tpu_custom_call.1} parent=23 // pred_fallthru
          _
        // Predicated region
        $region41: #{tpu_custom_call.1} parent=23 // pred_check
          %p199 = pneg %p55
        $region42: #{tpu_custom_call.1} parent=23 // pred_check_branch
          %201 = sbr.rel (%p199) target = $region44
        $region43: #{tpu_custom_call.1} parent=23 // pred_region
          %202 = dma.done [#allocation5], 16
        $region44: #{tpu_custom_call.1} parent=23 // pred_fallthru
          _
        %203 = sfence
      $region24: #{tpu_custom_call.1} parent=5 // pred_fallthru
        _
      %p204 = scmp.le.s32.totalorder 2, %s11
      // Predicated region
      $region45: #{tpu_custom_call.1} parent=5 // pred_check
        %p205 = pneg %p204
      $region46: #{tpu_custom_call.1} parent=5 // pred_check_branch
        %207 = sbr.rel (%p205) target = $region48
      $region47: #{tpu_custom_call.1} parent=5 // pred_region
        %s208 = ssub.s32 %s11, 2
      $region48: #{tpu_custom_call.1} parent=5 // pred_fallthru
        _
    $region6: #{tpu_custom_call.1} parent=1 // loop_footer
      %s15 = sadd.s32 1, %s11
    $region7: #{tpu_custom_call.1} parent=1 // loop_footer_branch
      %10 = sbr.rel target = $region3
    $region8: #{tpu_custom_call.1} parent=1 // loop_exit
      _
    %209 = vsyncpa [#allocation4], 1
    %s210 = scalar_lea.sflag [#allocation4], 1
    %211 = vsyncpa %s210, 1
    %212 = vsyncpa [#allocation5], 1
    %s213 = scalar_lea.sflag [#allocation5], 1
    %214 = vsyncpa %s213, 1

</llo_original>
